<compile_context>
chip_gen: v7x
topology: tpu7x:2x2x1
jax: 0.10.0
libtpu: 0.0.40
codegen_flags: <defaults>
</compile_context>

<pallas_src>
import functools

import jax
import jax.numpy as jnp
import numpy as np
from jax.experimental import pallas as pl
from jax.experimental.pallas import tpu as pltpu


def _cdiv(a, b):
    return -(-a // b)


def _round_up(a, b):
    return _cdiv(a, b) * b


def _taps_accumulate(win_ref, w_ref, b_ref, tl, img_w, kh_k, kw_k):
    """acc[o, p] = b[o] + sum_t W_t[o, :] @ win[:, d_t + p]  for p in [0, tl).

    win_ref : (c_red, tl + HL) VMEM scratch holding tile + halo lanes
    w_ref   : (KH*KW, Cout, c_red) per-tap weights (leading-axis indexed)
    b_ref   : (Cout, 1) f32 bias column
    """
    cout = w_ref.shape[1]
    acc = jnp.zeros((cout, tl), jnp.float32)
    for kh in range(kh_k):
        for kw in range(kw_k):
            d = kh * img_w + kw            # flat-pixel offset of tap (kh, kw)
            t = kh * kw_k + kw
            # TODO(synk): the lane-offset load below is the residual in-kernel
            # relayout; an im2col build (single K=KH*KW*c_red matmul) or a
            # pltpu.roll-based shift would restructure it but does not reduce
            # data movement at these channel counts.
            acc = acc + jnp.dot(w_ref[t], win_ref[:, d:d + tl],
                                preferred_element_type=jnp.float32)
    return acc + b_ref[...]


def _fused_kernel(xm_ref, xh_ref, w_ref, b_ref, o_ref, win_ref, *,
                  img_w, kh_k, kw_k):
    """1x1 conv pre-folded into the tap weights (Cmid >= Cin)."""
    tl = o_ref.shape[-1]
    # Two lane-aligned stores build the (Cin, tl + HL) window once per step.
    win_ref[:, :tl] = xm_ref[0]
    win_ref[:, tl:] = xh_ref[0]
    acc = _taps_accumulate(win_ref, w_ref, b_ref, tl, img_w, kh_k, kw_k)
    o_ref[0] = acc.astype(o_ref.dtype)        # single lane-dense store


def _two_stage_kernel(xm_ref, xh_ref, w1_ref, b1_ref, w_ref, b_ref, o_ref,
                      win_ref, *, img_w, kh_k, kw_k):
    """True dim-reduction path (Cmid < Cin): 1x1 conv on tile + halo, then taps."""
    tl = o_ref.shape[-1]
    dt = win_ref.dtype
    # 1x1 conv applied separately to the tile and the halo -> no concat needed.
    win_ref[:, :tl] = (jnp.dot(w1_ref[...], xm_ref[0],
                               preferred_element_type=jnp.float32)
                       + b1_ref[...]).astype(dt)
    win_ref[:, tl:] = (jnp.dot(w1_ref[...], xh_ref[0],
                               preferred_element_type=jnp.float32)
                       + b1_ref[...]).astype(dt)
    acc = _taps_accumulate(win_ref, w_ref, b_ref, tl, img_w, kh_k, kw_k)
    o_ref[0] = acc.astype(o_ref.dtype)        # single lane-dense store


def tied_dimred_conv(x_nchw, dr_weight, dr_bias, conv_weight, conv_bias, scale,
                     *, lane_tile=None, compute_dtype=jnp.bfloat16,
                     tile_vmem_budget=12 << 20):
    """Forward pass of TiedDimRedConv.

    x_nchw      : (N, Cin, H, W)        PyTorch NCHW layout
    dr_weight   : (Cmid, Cin, 1, 1)     tied dim_reducer weight (OIHW)
    dr_bias     : (Cmid,)
    conv_weight : (Cout, Cmid, KH, KW)  tied conv weight (OIHW)
    conv_bias   : (Cout,)
    scale       : python float — only feeds the dead conv branch (unused).
    lane_tile   : optional override of the lane tile (rounded up to a multiple
                  of the halo block); default is derived from tile_vmem_budget.
    compute_dtype : MXU input dtype (bf16 default halves HBM input traffic on
                  v5e/v6e/v7x; accumulation stays f32).
    tile_vmem_budget : per-step VMEM budget used to size the lane tile.  The
                  12 MiB default is safe against v5e's 16 MiB scoped default
                  and well under half of v7x's 64 MiB physical VMEM; raise it
                  (and vmem_limit below) only on v6e's 128 MiB headroom.
    returns     : (N, Cout, H-KH+1, W-KW+1)  NCHW, dtype of x_nchw
    """
    # The reference forward's F.conv2d(input, rescale(conv.weight, scale), ...)
    # result is immediately overwritten (dead code); `scale` is unused.
    del scale

    N, Cin, H, W = x_nchw.shape
    Cmid = dr_weight.shape[0]
    Cout, _, KH, KW = conv_weight.shape
    Hout, Wout = H - KH + 1, W - KW + 1
    P = H * W
    out_dtype = x_nchw.dtype
    cbytes = np.dtype(compute_dtype).itemsize

    # ---- activations: NCHW -> (N, Cin, H*W) is a free reshape (no transpose);
    # channels land on sublanes, flat pixels on lanes (lane-dense compute/store).
    x_flat = x_nchw.reshape(N, Cin, P).astype(compute_dtype)

    # ---- weight preparation (f32 math on host, compute_dtype into the MXU) --
    W1 = dr_weight[:, :, 0, 0].astype(jnp.float32)     # (Cmid, Cin)
    b1 = dr_bias.astype(jnp.float32)                   # (Cmid,)
    W2 = conv_weight.astype(jnp.float32)               # (Cout, Cmid, KH, KW)
    b2 = conv_bias.astype(jnp.float32)                 # (Cout,)

    # Fold the 1x1 conv into the KxK taps whenever it does not increase MACs
    # (always true for Cmid >= Cin); otherwise keep the two-stage form.
    fuse = KH * KW * Cin * Cout <= Cin * Cmid + KH * KW * Cmid * Cout
    if fuse:
        # w_taps[kh*KW+kw][o, i] = sum_m W2[o, m, kh, kw] * W1[m, i]
        w_taps = jnp.einsum("omhw,mi->hwoi", W2, W1).reshape(KH * KW, Cout, Cin)
        b_eff = (b2 + jnp.einsum("omhw,m->o", W2, b1)).reshape(Cout, 1)
        c_red = Cin
    else:
        w_taps = jnp.transpose(W2, (2, 3, 0, 1)).reshape(KH * KW, Cout, Cmid)
        b_eff = b2.reshape(Cout, 1)
        c_red = Cmid
    w_taps = w_taps.astype(compute_dtype)
    w1_mat = W1.astype(compute_dtype)                   # (Cmid, Cin)
    b1_col = b1.reshape(Cmid, 1)                        # f32

    # ---- lane tiling with a lane halo ---------------------------------------
    halo = (KH - 1) * W + (KW - 1)          # largest flat-pixel tap offset
    HL = max(128, _round_up(halo, 128))     # halo block lanes (multiple of 128)

    # Per-lane VMEM bytes of everything that scales with the lane tile
    # (double-buffered I/O + scratch window + f32 accumulator + tap-load temp).
    per_lane = (2 * Cin * cbytes            # x main tile, double buffered
                + 2 * Cout * 4              # output tile (f32), double buffered
                + c_red * cbytes            # scratch window (tile part)
                + c_red * cbytes            # shifted tap-load temporary
                + Cout * 4)                 # f32 accumulator
    if not fuse:
        per_lane += Cmid * 4                # 1x1 f32 dot result before cast
    fixed = (2 * Cin * HL * cbytes          # halo block, double buffered
             + c_red * HL * cbytes          # scratch window (halo part)
             + 2 * KH * KW * Cout * c_red * cbytes
             + 2 * Cin * Cmid * cbytes + 8 * (Cmid + Cout))
    tl = max(HL, ((tile_vmem_budget - fixed) // per_lane) // HL * HL)
    tl = min(tl, _round_up(P, HL))          # never bigger than one image
    if lane_tile is not None:
        tl = max(HL, _round_up(int(lane_tile), HL))

    P_pad = _round_up(P, tl)
    if P_pad != P:
        # TODO(synk): this pad is one extra HBM pass over x; images whose H*W
        # is already a multiple of 128 (or a producer that emits padded P)
        # avoid it entirely.
        x_flat = jnp.pad(x_flat, ((0, 0), (0, 0), (0, P_pad - P)))
    n_pt = P_pad // tl
    n_hblk = P_pad // HL
    halo_stride = tl // HL                  # tl is a multiple of HL

    xm_spec = pl.BlockSpec((1, Cin, tl), lambda n, p: (n, 0, p))
    # Halo: the HL lanes right after this tile, clamped at the end of the SAME
    # image (N is its own block axis -> no cross-image reads).  For every VALID
    # output pixel p (h < Hout, w < Wout) the taps read p + d <= P - 1, which
    # lies inside [tile, tile + halo) real data; clamped / zero-padded halo
    # lanes are only consumed by non-valid pixels, sliced off below.
    xh_spec = pl.BlockSpec(
        (1, Cin, HL),
        lambda n, p: (n, 0, jnp.minimum((p + 1) * halo_stride, n_hblk - 1)))
    w_spec = pl.BlockSpec((KH * KW, Cout, c_red), lambda n, p: (0, 0, 0))
    b_spec = pl.BlockSpec((Cout, 1), lambda n, p: (0, 0))
    out_spec = pl.BlockSpec((1, Cout, tl), lambda n, p: (n, 0, p))

    if fuse:
        kernel = functools.partial(_fused_kernel, img_w=W, kh_k=KH, kw_k=KW)
        in_specs = [xm_spec, xh_spec, w_spec, b_spec]
        operands = (x_flat, x_flat, w_taps, b_eff)
        flops = 2 * N * P_pad * KH * KW * c_red * Cout
    else:
        kernel = functools.partial(_two_stage_kernel, img_w=W, kh_k=KH, kw_k=KW)
        w1_spec = pl.BlockSpec((Cmid, Cin), lambda n, p: (0, 0))
        b1_spec = pl.BlockSpec((Cmid, 1), lambda n, p: (0, 0))
        in_specs = [xm_spec, xh_spec, w1_spec, b1_spec, w_spec, b_spec]
        operands = (x_flat, x_flat, w1_mat, b1_col, w_taps, b_eff)
        flops = 2 * N * (n_pt * (tl + HL) * Cin * Cmid
                         + P_pad * KH * KW * c_red * Cout)

    bytes_accessed = int(
        cbytes * N * (P_pad + n_pt * HL) * Cin          # main + halo reads
        + 4 * N * P_pad * Cout                          # output writes
        + cbytes * (KH * KW * Cout * c_red + Cin * Cmid)
        + 4 * (Cmid + Cout))

    per_step_vmem = fixed + per_lane * tl
    vmem_limit = int(min(48 << 20, max(32 << 20, 2 * per_step_vmem + (1 << 20))))

    out_flat = pl.pallas_call(
        kernel,
        out_shape=jax.ShapeDtypeStruct((N, Cout, P_pad), out_dtype),
        grid=(N, n_pt),
        in_specs=in_specs,
        out_specs=out_spec,
        scratch_shapes=[pltpu.VMEM((c_red, tl + HL), compute_dtype)],
        compiler_params=pltpu.CompilerParams(
            dimension_semantics=("parallel", "parallel"),
            vmem_limit_bytes=vmem_limit),
        cost_estimate=pl.CostEstimate(flops=int(flops), transcendentals=0,
                                      bytes_accessed=bytes_accessed),
    )(*operands)

    # VALID window: lanes map 1:1 to input flat pixels (h*W + w); keep only
    # h < Hout, w < Wout.  The pad slice + reshape are free when P_pad == P.
    out = out_flat[:, :, :P].reshape(N, Cout, H, W)
    return out[:, :, :Hout, :Wout]


def _ref_forward(x, dr_w, dr_b, cv_w, cv_b):
    """Pure-JAX reference of the effective forward (for correctness check)."""
    dn = ("NCHW", "OIHW", "NCHW")
    x1 = jax.lax.conv_general_dilated(x, dr_w, (1, 1), "VALID",
                                      dimension_numbers=dn)
    x1 = x1 + dr_b[None, :, None, None]
    x2 = jax.lax.conv_general_dilated(x1, cv_w, (1, 1), "VALID",
                                      dimension_numbers=dn)
    return x2 + cv_b[None, :, None, None]


if __name__ == "__main__":
    key = jax.random.PRNGKey(0)
    ks = jax.random.split(key, 10)

    N, H, W, K = 2, 16, 16, 3

    # ---- Config A: Cmid == Cin -> fused path (1x1 folded into the taps) ----
    Cin, Cmid, Cout = 4, 4, 8
    x = jax.random.normal(ks[0], (N, Cin, H, W), dtype=jnp.float32)
    dr_w = jax.random.normal(ks[1], (Cmid, Cin, 1, 1), dtype=jnp.float32) * 0.2
    dr_b = jax.random.normal(ks[2], (Cmid,), dtype=jnp.float32) * 0.1
    cv_w = jax.random.normal(ks[3], (Cout, Cmid, K, K), dtype=jnp.float32) * 0.2
    cv_b = jax.random.normal(ks[4], (Cout,), dtype=jnp.float32) * 0.1
    ref_a = _ref_forward(x, dr_w, dr_b, cv_w, cv_b)

    # f32 compute, forced 128-lane tiles (exercises the multi-tile halo path):
    out_a32 = jax.block_until_ready(tied_dimred_conv(
        x, dr_w, dr_b, cv_w, cv_b, 0.5,
        lane_tile=128, compute_dtype=jnp.float32))
    assert out_a32.shape == (N, Cout, H - K + 1, W - K + 1), out_a32.shape
    err = float(jnp.max(jnp.abs(out_a32 - ref_a)))
    assert jnp.allclose(out_a32, ref_a, atol=2e-3, rtol=2e-3), f"fused f32 err={err}"

    # bf16 fast path (default), whole image per lane tile:
    out_a16 = jax.block_until_ready(tied_dimred_conv(
        x, dr_w, dr_b, cv_w, cv_b, 0.5))
    err = float(jnp.max(jnp.abs(out_a16 - ref_a)))
    assert jnp.allclose(out_a16, ref_a, atol=1.2e-1, rtol=1.2e-1), f"fused bf16 err={err}"

    # ---- Config B: Cmid < Cin -> true dim reduction, two-stage kernel ------
    Cin2, Cmid2, Cout2 = 8, 4, 8
    x2 = jax.random.normal(ks[5], (N, Cin2, H, W), dtype=jnp.float32)
    dr_w2 = jax.random.normal(ks[6], (Cmid2, Cin2, 1, 1), dtype=jnp.float32) * 0.2
    dr_b2 = jax.random.normal(ks[7], (Cmid2,), dtype=jnp.float32) * 0.1
    cv_w2 = jax.random.normal(ks[8], (Cout2, Cmid2, K, K), dtype=jnp.float32) * 0.2
    cv_b2 = jax.random.normal(ks[9], (Cout2,), dtype=jnp.float32) * 0.1
    ref_b = _ref_forward(x2, dr_w2, dr_b2, cv_w2, cv_b2)

    out_b32 = jax.block_until_ready(tied_dimred_conv(
        x2, dr_w2, dr_b2, cv_w2, cv_b2, 0.5, compute_dtype=jnp.float32))
    assert out_b32.shape == (N, Cout2, H - K + 1, W - K + 1), out_b32.shape
    err = float(jnp.max(jnp.abs(out_b32 - ref_b)))
    assert jnp.allclose(out_b32, ref_b, atol=2e-3, rtol=2e-3), f"2stage f32 err={err}"

    out_b16 = jax.block_until_ready(tied_dimred_conv(
        x2, dr_w2, dr_b2, cv_w2, cv_b2, 0.5, lane_tile=128))
    err = float(jnp.max(jnp.abs(out_b16 - ref_b)))
    assert jnp.allclose(out_b16, ref_b, atol=1.2e-1, rtol=1.2e-1), f"2stage bf16 err={err}"

    print("KERNEL_OK")
</pallas_src>

<mosaic_0001>
module attributes {stable_mosaic.version = 11 : i64} {
  func.func @_fused_kernel(%arg0: i32, %arg1: i32, %arg2: memref<1x4x128xf32, #tpu.memory_space<vmem>>, %arg3: memref<1x4x128xf32, #tpu.memory_space<vmem>>, %arg4: memref<9x8x4xf32, #tpu.memory_space<vmem>>, %arg5: memref<8x1xf32, #tpu.memory_space<vmem>>, %arg6: memref<1x8x128xf32, #tpu.memory_space<vmem>>, %arg7: memref<4x256xf32, #tpu.memory_space<vmem>>) attributes {dimension_semantics = [#tpu.dimension_semantics<parallel>, #tpu.dimension_semantics<parallel>], iteration_bounds = array<i64: 2, 2>, scalar_prefetch = 0 : i64, scratch_operands = 1 : i64, tpu.core_type = #tpu.core_type<tc>, window_params = [{transform_indices = @transform_0, window_bounds = array<i64: 1, 4, 128>}, {transform_indices = @transform_1, window_bounds = array<i64: 1, 4, 128>}, {pipeline_mode = #tpu.pipeline_mode<synchronous>, transform_indices = @transform_2, window_bounds = array<i64: 9, 8, 4>}, {pipeline_mode = #tpu.pipeline_mode<synchronous>, transform_indices = @transform_3, window_bounds = array<i64: 8, 1>}, {transform_indices = @transform_4, window_bounds = array<i64: 1, 8, 128>}]} {
    %c0 = arith.constant 0 : index
    %c0_0 = arith.constant 0 : index
    %c0_1 = arith.constant 0 : index
    %0 = vector.load %arg2[%c0, %c0_0, %c0_1] : memref<1x4x128xf32, #tpu.memory_space<vmem>>, vector<1x4x128xf32>
    %1 = vector.shape_cast %0 : vector<1x4x128xf32> to vector<4x128xf32>
    %c0_2 = arith.constant 0 : index
    %c0_3 = arith.constant 0 : index
    %2 = vector.load %arg7[%c0_2, %c0_3] : memref<4x256xf32, #tpu.memory_space<vmem>>, vector<4x128xf32>
    tpu.vector_store %arg7[%c0_2, %c0_3], %1 {strides = array<i32>} : memref<4x256xf32, #tpu.memory_space<vmem>>, vector<4x128xf32>,
    %c0_4 = arith.constant 0 : index
    %c0_5 = arith.constant 0 : index
    %c0_6 = arith.constant 0 : index
    %3 = vector.load %arg3[%c0_4, %c0_5, %c0_6] : memref<1x4x128xf32, #tpu.memory_space<vmem>>, vector<1x4x128xf32>
    %4 = vector.shape_cast %3 : vector<1x4x128xf32> to vector<4x128xf32>
    %c0_7 = arith.constant 0 : index
    %c128 = arith.constant 128 : index
    %5 = vector.load %arg7[%c0_7, %c128] : memref<4x256xf32, #tpu.memory_space<vmem>>, vector<4x128xf32>
    tpu.vector_store %arg7[%c0_7, %c128], %4 {strides = array<i32>} : memref<4x256xf32, #tpu.memory_space<vmem>>, vector<4x128xf32>,
    %cst = arith.constant 0.000000e+00 : f32
    %6 = vector.broadcast %cst : f32 to vector<8x128xf32>
    %c0_8 = arith.constant 0 : index
    %c0_9 = arith.constant 0 : index
    %c0_10 = arith.constant 0 : index
    %7 = vector.load %arg4[%c0_8, %c0_9, %c0_10] : memref<9x8x4xf32, #tpu.memory_space<vmem>>, vector<1x8x4xf32>
    %8 = vector.shape_cast %7 : vector<1x8x4xf32> to vector<8x4xf32>
    %c0_11 = arith.constant 0 : index
    %c0_12 = arith.constant 0 : index
    %9 = vector.load %arg7[%c0_11, %c0_12] : memref<4x256xf32, #tpu.memory_space<vmem>>, vector<4x128xf32>
    %cst_13 = arith.constant dense<0.000000e+00> : vector<8x128xf32>
    %10 = tpu.matmul %8, %9, %cst_13 {dimension_numbers = #tpu.dot_dimension_numbers<[1], [0], [0], [1], [0, 0, 1, 1], [], []>} : vector<8x4xf32>, vector<4x128xf32>, vector<8x128xf32> -> vector<8x128xf32>
    %11 = arith.addf %6, %10 : vector<8x128xf32>
    %c1 = arith.constant 1 : index
    %c0_14 = arith.constant 0 : index
    %c0_15 = arith.constant 0 : index
    %12 = vector.load %arg4[%c1, %c0_14, %c0_15] : memref<9x8x4xf32, #tpu.memory_space<vmem>>, vector<1x8x4xf32>
    %13 = vector.shape_cast %12 : vector<1x8x4xf32> to vector<8x4xf32>
    %c0_16 = arith.constant 0 : index
    %c1_17 = arith.constant 1 : index
    %14 = vector.load %arg7[%c0_16, %c1_17] : memref<4x256xf32, #tpu.memory_space<vmem>>, vector<4x128xf32>
    %cst_18 = arith.constant dense<0.000000e+00> : vector<8x128xf32>
    %15 = tpu.matmul %13, %14, %cst_18 {dimension_numbers = #tpu.dot_dimension_numbers<[1], [0], [0], [1], [0, 0, 1, 1], [], []>} : vector<8x4xf32>, vector<4x128xf32>, vector<8x128xf32> -> vector<8x128xf32>
    %16 = arith.addf %11, %15 : vector<8x128xf32>
    %c2 = arith.constant 2 : index
    %c0_19 = arith.constant 0 : index
    %c0_20 = arith.constant 0 : index
    %17 = vector.load %arg4[%c2, %c0_19, %c0_20] : memref<9x8x4xf32, #tpu.memory_space<vmem>>, vector<1x8x4xf32>
    %18 = vector.shape_cast %17 : vector<1x8x4xf32> to vector<8x4xf32>
    %c0_21 = arith.constant 0 : index
    %c2_22 = arith.constant 2 : index
    %19 = vector.load %arg7[%c0_21, %c2_22] : memref<4x256xf32, #tpu.memory_space<vmem>>, vector<4x128xf32>
    %cst_23 = arith.constant dense<0.000000e+00> : vector<8x128xf32>
    %20 = tpu.matmul %18, %19, %cst_23 {dimension_numbers = #tpu.dot_dimension_numbers<[1], [0], [0], [1], [0, 0, 1, 1], [], []>} : vector<8x4xf32>, vector<4x128xf32>, vector<8x128xf32> -> vector<8x128xf32>
    %21 = arith.addf %16, %20 : vector<8x128xf32>
    %c3 = arith.constant 3 : index
    %c0_24 = arith.constant 0 : index
    %c0_25 = arith.constant 0 : index
    %22 = vector.load %arg4[%c3, %c0_24, %c0_25] : memref<9x8x4xf32, #tpu.memory_space<vmem>>, vector<1x8x4xf32>
    %23 = vector.shape_cast %22 : vector<1x8x4xf32> to vector<8x4xf32>
    %c0_26 = arith.constant 0 : index
    %c16 = arith.constant 16 : index
    %24 = vector.load %arg7[%c0_26, %c16] : memref<4x256xf32, #tpu.memory_space<vmem>>, vector<4x128xf32>
    %cst_27 = arith.constant dense<0.000000e+00> : vector<8x128xf32>
    %25 = tpu.matmul %23, %24, %cst_27 {dimension_numbers = #tpu.dot_dimension_numbers<[1], [0], [0], [1], [0, 0, 1, 1], [], []>} : vector<8x4xf32>, vector<4x128xf32>, vector<8x128xf32> -> vector<8x128xf32>
    %26 = arith.addf %21, %25 : vector<8x128xf32>
    %c4 = arith.constant 4 : index
    %c0_28 = arith.constant 0 : index
    %c0_29 = arith.constant 0 : index
    %27 = vector.load %arg4[%c4, %c0_28, %c0_29] : memref<9x8x4xf32, #tpu.memory_space<vmem>>, vector<1x8x4xf32>
    %28 = vector.shape_cast %27 : vector<1x8x4xf32> to vector<8x4xf32>
    %c0_30 = arith.constant 0 : index
    %c17 = arith.constant 17 : index
    %29 = vector.load %arg7[%c0_30, %c17] : memref<4x256xf32, #tpu.memory_space<vmem>>, vector<4x128xf32>
    %cst_31 = arith.constant dense<0.000000e+00> : vector<8x128xf32>
    %30 = tpu.matmul %28, %29, %cst_31 {dimension_numbers = #tpu.dot_dimension_numbers<[1], [0], [0], [1], [0, 0, 1, 1], [], []>} : vector<8x4xf32>, vector<4x128xf32>, vector<8x128xf32> -> vector<8x128xf32>
    %31 = arith.addf %26, %30 : vector<8x128xf32>
    %c5 = arith.constant 5 : index
    %c0_32 = arith.constant 0 : index
    %c0_33 = arith.constant 0 : index
    %32 = vector.load %arg4[%c5, %c0_32, %c0_33] : memref<9x8x4xf32, #tpu.memory_space<vmem>>, vector<1x8x4xf32>
    %33 = vector.shape_cast %32 : vector<1x8x4xf32> to vector<8x4xf32>
    %c0_34 = arith.constant 0 : index
    %c18 = arith.constant 18 : index
    %34 = vector.load %arg7[%c0_34, %c18] : memref<4x256xf32, #tpu.memory_space<vmem>>, vector<4x128xf32>
    %cst_35 = arith.constant dense<0.000000e+00> : vector<8x128xf32>
    %35 = tpu.matmul %33, %34, %cst_35 {dimension_numbers = #tpu.dot_dimension_numbers<[1], [0], [0], [1], [0, 0, 1, 1], [], []>} : vector<8x4xf32>, vector<4x128xf32>, vector<8x128xf32> -> vector<8x128xf32>
    %36 = arith.addf %31, %35 : vector<8x128xf32>
    %c6 = arith.constant 6 : index
    %c0_36 = arith.constant 0 : index
    %c0_37 = arith.constant 0 : index
    %37 = vector.load %arg4[%c6, %c0_36, %c0_37] : memref<9x8x4xf32, #tpu.memory_space<vmem>>, vector<1x8x4xf32>
    %38 = vector.shape_cast %37 : vector<1x8x4xf32> to vector<8x4xf32>
    %c0_38 = arith.constant 0 : index
    %c32 = arith.constant 32 : index
    %39 = vector.load %arg7[%c0_38, %c32] : memref<4x256xf32, #tpu.memory_space<vmem>>, vector<4x128xf32>
    %cst_39 = arith.constant dense<0.000000e+00> : vector<8x128xf32>
    %40 = tpu.matmul %38, %39, %cst_39 {dimension_numbers = #tpu.dot_dimension_numbers<[1], [0], [0], [1], [0, 0, 1, 1], [], []>} : vector<8x4xf32>, vector<4x128xf32>, vector<8x128xf32> -> vector<8x128xf32>
    %41 = arith.addf %36, %40 : vector<8x128xf32>
    %c7 = arith.constant 7 : index
    %c0_40 = arith.constant 0 : index
    %c0_41 = arith.constant 0 : index
    %42 = vector.load %arg4[%c7, %c0_40, %c0_41] : memref<9x8x4xf32, #tpu.memory_space<vmem>>, vector<1x8x4xf32>
    %43 = vector.shape_cast %42 : vector<1x8x4xf32> to vector<8x4xf32>
    %c0_42 = arith.constant 0 : index
    %c33 = arith.constant 33 : index
    %44 = vector.load %arg7[%c0_42, %c33] : memref<4x256xf32, #tpu.memory_space<vmem>>, vector<4x128xf32>
    %cst_43 = arith.constant dense<0.000000e+00> : vector<8x128xf32>
    %45 = tpu.matmul %43, %44, %cst_43 {dimension_numbers = #tpu.dot_dimension_numbers<[1], [0], [0], [1], [0, 0, 1, 1], [], []>} : vector<8x4xf32>, vector<4x128xf32>, vector<8x128xf32> -> vector<8x128xf32>
    %46 = arith.addf %41, %45 : vector<8x128xf32>
    %c8 = arith.constant 8 : index
    %c0_44 = arith.constant 0 : index
    %c0_45 = arith.constant 0 : index
    %47 = vector.load %arg4[%c8, %c0_44, %c0_45] : memref<9x8x4xf32, #tpu.memory_space<vmem>>, vector<1x8x4xf32>
    %48 = vector.shape_cast %47 : vector<1x8x4xf32> to vector<8x4xf32>
    %c0_46 = arith.constant 0 : index
    %c34 = arith.constant 34 : index
    %49 = vector.load %arg7[%c0_46, %c34] : memref<4x256xf32, #tpu.memory_space<vmem>>, vector<4x128xf32>
    %cst_47 = arith.constant dense<0.000000e+00> : vector<8x128xf32>
    %50 = tpu.matmul %48, %49, %cst_47 {dimension_numbers = #tpu.dot_dimension_numbers<[1], [0], [0], [1], [0, 0, 1, 1], [], []>} : vector<8x4xf32>, vector<4x128xf32>, vector<8x128xf32> -> vector<8x128xf32>
    %51 = arith.addf %46, %50 : vector<8x128xf32>
    %c0_48 = arith.constant 0 : index
    %c0_49 = arith.constant 0 : index
    %52 = vector.load %arg5[%c0_48, %c0_49] : memref<8x1xf32, #tpu.memory_space<vmem>>, vector<8x1xf32>
    %53 = vector.broadcast %52 : vector<8x1xf32> to vector<8x128xf32>
    %54 = arith.addf %51, %53 : vector<8x128xf32>
    %c0_50 = arith.constant 0 : index
    %c0_51 = arith.constant 0 : index
    %c0_52 = arith.constant 0 : index
    %55 = vector.load %arg6[%c0_50, %c0_51, %c0_52] : memref<1x8x128xf32, #tpu.memory_space<vmem>>, vector<1x8x128xf32>
    %56 = vector.shape_cast %55 : vector<1x8x128xf32> to vector<8x128xf32>
    %57 = vector.shape_cast %54 : vector<8x128xf32> to vector<1x8x128xf32>
    tpu.vector_store %arg6[%c0_50, %c0_51, %c0_52], %57 {strides = array<i32>} : memref<1x8x128xf32, #tpu.memory_space<vmem>>, vector<1x8x128xf32>,
    return
  }
  func.func @transform_0(%arg0: i32, %arg1: i32) -> (i32, i32, i32) {
    %c0_i32 = arith.constant 0 : i32
    %c0_i32_0 = arith.constant 0 : i32
    return %arg0, %c0_i32, %arg1 : i32, i32, i32
  }
  func.func @transform_1(%arg0: i32, %arg1: i32) -> (i32, i32, i32) {
    %c1_i32 = arith.constant 1 : i32
    %0 = arith.addi %arg1, %c1_i32 : i32
    %c1_i32_0 = arith.constant 1 : i32
    %1 = arith.muli %0, %c1_i32_0 : i32
    %c1_i32_1 = arith.constant 1 : i32
    %2 = arith.minsi %1, %c1_i32_1 : i32
    %c0_i32 = arith.constant 0 : i32
    %c0_i32_2 = arith.constant 0 : i32
    return %arg0, %c0_i32, %2 : i32, i32, i32
  }
  func.func @transform_2(%arg0: i32, %arg1: i32) -> (i32, i32, i32) {
    %c0_i32 = arith.constant 0 : i32
    %c0_i32_0 = arith.constant 0 : i32
    %c0_i32_1 = arith.constant 0 : i32
    %c0_i32_2 = arith.constant 0 : i32
    return %c0_i32, %c0_i32_0, %c0_i32_1 : i32, i32, i32
  }
  func.func @transform_3(%arg0: i32, %arg1: i32) -> (i32, i32) {
    %c0_i32 = arith.constant 0 : i32
    %c0_i32_0 = arith.constant 0 : i32
    %c0_i32_1 = arith.constant 0 : i32
    return %c0_i32, %c0_i32_0 : i32, i32
  }
  func.func @transform_4(%arg0: i32, %arg1: i32) -> (i32, i32, i32) {
    %c0_i32 = arith.constant 0 : i32
    %c0_i32_0 = arith.constant 0 : i32
    return %arg0, %c0_i32, %arg1 : i32, i32, i32
  }
}

</mosaic_0001>

<llo_original>
// kernel: tpu_custom_call.1
$region0: #{tpu_custom_call.1}
  #allocation0 [shape = 'u32[]', space=smem, size = 0x4, offset = 0x4, fixed_abs, tag = 'smem constant byte address 0x4 - core index']
  #allocation1 [shape = 'u32[144,128]{1,0:T(1,128)}', space=vmem, size = 0x12000, scoped, tag = 'internal scratch']
  #allocation2 [shape = 'f32[4,256]{1,0:T(4,128)}', space=vmem, size = 0x1000, scoped, tag = 'scratch operand']
  %s0 = inlined_call_operand.vmem [shape: f32[2,4,256], index: 0, kind: input, shape index: {}]
  %s1 = inlined_call_operand.vmem [shape: f32[2,4,256], index: 1, kind: input, shape index: {}]
  %s2 = inlined_call_operand.vmem [shape: f32[9,8,4], index: 2, kind: input, shape index: {}]
  %s3 = inlined_call_operand.vmem [shape: f32[8,1], index: 3, kind: input, shape index: {}]
  %s4 = inlined_call_operand.hbm [shape: f32[2,8,256], index: 4, kind: output, shape index: {}]
  %s5 = sld [smem:[#allocation0]]
  $region49: #{tpu_custom_call.1} parent=0
    _
  %s7 = ssub.s32 1, %s5
  %s8 = scalar_select 0, %s7, %s5
  $region1: #{tpu_custom_call.1} parent=0
    #allocation3 [shape = 'u8[8192]{0}', space=vmem, size = 0x2000, scoped, tag = 'output window, operand 0']
    #allocation4 [shape = 's32[2]{0}', space=sflag, size = 0x8, scoped, tag = 'scoped memory for tpu_custom_call.1']
    %9 = vsyncpa [#allocation4], 0
    %s10 = scalar_lea.sflag [#allocation4], 1
    %11 = vsyncpa %s10, 0
    loop: start=0, step=1, limit=6
    $region2: #{tpu_custom_call.1} parent=1 // loop_pre_header
      _
    $region3: #{tpu_custom_call.1} parent=1 // loop_header
      %s13 = sphi 0, %s17
      %p14 = scmp.ge.s32.totalorder %s13, 6
      %s20 = sphi 0, %s32
      %s21 = sphi 0, %s28
      %s22 = sphi 0, %s20
      %s23 = sphi 0, %s21
      %s24 = sphi 0, %s22
      %s25 = sphi 0, %s23
      %s37 = sphi 0, %s39
      %s40 = sphi 0, %s37
      %s41 = sphi 0, %s40
      %s57 = sphi 0, %s41
      %s71 = sphi 0, %s73
      %s74 = sphi 0, %s71
      %s75 = sphi 0, %s74
      %s91 = sphi 0, %s75
      %s95 = sphi 0, %s95
      %s97 = sphi 0, %s95
      %s98 = sphi 0, %s97
      %s112 = sphi 0, %s98
      %s116 = sphi 0, %s116
      %s118 = sphi 0, %s116
      %s119 = sphi 0, %s118
      %s133 = sphi 0, %s119
      %s141 = sphi 0, %s143
      %s144 = sphi 0, %s141
      %s145 = sphi 0, %s144
      %s161 = sphi 0, %s145
    $region4: #{tpu_custom_call.1} parent=1 // loop_header_branch
      %16 = sbr.rel (%p14) target = $region8
    $region5: #{tpu_custom_call.1} parent=1 // loop_body
      %s18 = ssub.s32 %s13, 1
      %s19 = ssub.s32 %s13, 2
      %s26 = sadd.s32 1, %s21
      %p27 = scmp.ge.s32.totalorder %s26, 2
      %s28 = scalar_select %p27, 0, %s26
      %s29 = sadd.s32 1, %s20
      %s30 = scalar_select %p27, %s29, %s20
      %p31 = scmp.ge.s32.totalorder %s30, 2
      %s32 = scalar_select %p31, 0, %s30
      %s33 = ssub.s32 %s20, %s32
      %s34 = ssub.s32 %s21, %s28
      %s35 = sor.u32 %s33, %s34
      %p36 = scmp.eq.s32.totalorder %s35, 0
      %s38 = sadd.s32 %s37, 1
      %s39 = scalar_select %p36, %s37, %s38
      %p42 = pneg %p36
      %p43 = scmp.eq.s32.totalorder %s13, 3
      %p44 = por %p42, %p43
      %p45 = scmp.ne.s32.totalorder %s37, %s40
      %p46 = scmp.eq.s32.totalorder %s13, 0
      %p47 = por %p45, %p46
      %p48 = scmp.ne.s32.totalorder %s37, %s40
      %p49 = scmp.eq.s32.totalorder %s18, 3
      %p50 = por %p48, %p49
      %p51 = scmp.ne.s32.totalorder %s40, %s41
      %p52 = scmp.eq.s32.totalorder %s18, 0
      %p53 = por %p51, %p52
      %p54 = scmp.ne.s32.totalorder %s40, %s41
      %p55 = scmp.eq.s32.totalorder %s19, 3
      %p56 = por %p54, %p55
      %p58 = scmp.ne.s32.totalorder %s41, %s57
      %p59 = scmp.eq.s32.totalorder %s19, 0
      %p60 = por %p58, %p59
      %s61 = sadd.s32 %s21, 1
      %p62 = scmp.lt.s32.totalorder %s61, 1
      %s63 = scalar_select %p62, %s61, 1
      %s64 = sadd.s32 %s28, 1
      %p65 = scmp.lt.s32.totalorder %s64, 1
      %s66 = scalar_select %p65, %s64, 1
      %s67 = ssub.s32 %s20, %s32
      %s68 = ssub.s32 %s63, %s66
      %s69 = sor.u32 %s67, %s68
      %p70 = scmp.eq.s32.totalorder %s69, 0
      %s72 = sadd.s32 %s71, 1
      %s73 = scalar_select %p70, %s71, %s72
      %p76 = pneg %p70
      %p77 = scmp.eq.s32.totalorder %s13, 3
      %p78 = por %p76, %p77
      %p79 = scmp.ne.s32.totalorder %s71, %s74
      %p80 = scmp.eq.s32.totalorder %s13, 0
      %p81 = por %p79, %p80
      %p82 = scmp.ne.s32.totalorder %s71, %s74
      %p83 = scmp.eq.s32.totalorder %s18, 3
      %p84 = por %p82, %p83
      %p85 = scmp.ne.s32.totalorder %s74, %s75
      %p86 = scmp.eq.s32.totalorder %s18, 0
      %p87 = por %p85, %p86
      %p88 = scmp.ne.s32.totalorder %s74, %s75
      %p89 = scmp.eq.s32.totalorder %s19, 3
      %p90 = por %p88, %p89
      %p92 = scmp.ne.s32.totalorder %s75, %s91
      %p93 = scmp.eq.s32.totalorder %s19, 0
      %p94 = por %p92, %p93
      %s96 = sadd.s32 %s95, 1
      %p99 = scmp.eq.s32.totalorder %s13, 3
      %p100 = scmp.ne.s32.totalorder %s95, %s97
      %p101 = scmp.eq.s32.totalorder %s13, 0
      %p102 = por %p100, %p101
      %p103 = scmp.ne.s32.totalorder %s95, %s97
      %p104 = scmp.eq.s32.totalorder %s18, 3
      %p105 = por %p103, %p104
      %p106 = scmp.ne.s32.totalorder %s97, %s98
      %p107 = scmp.eq.s32.totalorder %s18, 0
      %p108 = por %p106, %p107
      %p109 = scmp.ne.s32.totalorder %s97, %s98
      %p110 = scmp.eq.s32.totalorder %s19, 3
      %p111 = por %p109, %p110
      %p113 = scmp.ne.s32.totalorder %s98, %s112
      %p114 = scmp.eq.s32.totalorder %s19, 0
      %p115 = por %p113, %p114
      %s117 = sadd.s32 %s116, 1
      %p120 = scmp.eq.s32.totalorder %s13, 3
      %p121 = scmp.ne.s32.totalorder %s116, %s118
      %p122 = scmp.eq.s32.totalorder %s13, 0
      %p123 = por %p121, %p122
      %p124 = scmp.ne.s32.totalorder %s116, %s118
      %p125 = scmp.eq.s32.totalorder %s18, 3
      %p126 = por %p124, %p125
      %p127 = scmp.ne.s32.totalorder %s118, %s119
      %p128 = scmp.eq.s32.totalorder %s18, 0
      %p129 = por %p127, %p128
      %p130 = scmp.ne.s32.totalorder %s118, %s119
      %p131 = scmp.eq.s32.totalorder %s19, 3
      %p132 = por %p130, %p131
      %p134 = scmp.ne.s32.totalorder %s119, %s133
      %p135 = scmp.eq.s32.totalorder %s19, 0
      %p136 = por %p134, %p135
      %s137 = ssub.s32 %s20, %s32
      %s138 = ssub.s32 %s21, %s28
      %s139 = sor.u32 %s137, %s138
      %p140 = scmp.eq.s32.totalorder %s139, 0
      %s142 = sadd.s32 %s141, 1
      %s143 = scalar_select %p140, %s141, %s142
      %p146 = pneg %p140
      %p147 = scmp.eq.s32.totalorder %s13, 3
      %p148 = por %p146, %p147
      %p149 = scmp.ne.s32.totalorder %s141, %s144
      %p150 = scmp.eq.s32.totalorder %s13, 0
      %p151 = por %p149, %p150
      %p152 = scmp.ne.s32.totalorder %s141, %s144
      %p153 = scmp.eq.s32.totalorder %s18, 3
      %p154 = por %p152, %p153
      %p155 = scmp.ne.s32.totalorder %s144, %s145
      %p156 = scmp.eq.s32.totalorder %s18, 0
      %p157 = por %p155, %p156
      %p158 = scmp.ne.s32.totalorder %s144, %s145
      %p159 = scmp.eq.s32.totalorder %s19, 3
      %p160 = por %p158, %p159
      %p162 = scmp.ne.s32.totalorder %s145, %s161
      %p163 = scmp.eq.s32.totalorder %s19, 0
      %p164 = por %p162, %p163
      %p165 = scmp.le.s32.totalorder 1, %s13
      %p166 = scmp.lt.s32.totalorder %s13, 5
      %p167 = pnand %p165, %p166
      %p168 = pneg %p167
      // Predicated region
      $region9: #{tpu_custom_call.1} parent=5 // pred_check
        _
      $region10: #{tpu_custom_call.1} parent=5 // pred_check_branch
        %170 = sbr.rel (%p167) target = $region12
      $region11: #{tpu_custom_call.1} parent=5 // pred_region
        %s171 = ssub.s32 %s13, 1
        // Predicated region
        $region13: #{tpu_custom_call.1} parent=11 // pred_check
          %p172 = pneg %p108
        $region14: #{tpu_custom_call.1} parent=11 // pred_check_branch
          %174 = sbr.rel (%p172) target = $region16
        $region15: #{tpu_custom_call.1} parent=11 // pred_region
          _
        $region16: #{tpu_custom_call.1} parent=11 // pred_fallthru
          _
        // Predicated region
        $region17: #{tpu_custom_call.1} parent=11 // pred_check
          %p175 = pneg %p129
        $region18: #{tpu_custom_call.1} parent=11 // pred_check_branch
          %177 = sbr.rel (%p175) target = $region20
        $region19: #{tpu_custom_call.1} parent=11 // pred_region
          _
        $region20: #{tpu_custom_call.1} parent=11 // pred_fallthru
          _
      $region12: #{tpu_custom_call.1} parent=5 // pred_fallthru
        _
      %p178 = scmp.lt.s32.totalorder %s13, 4
      // Predicated region
      $region21: #{tpu_custom_call.1} parent=5 // pred_check
        %p179 = pneg %p178
      $region22: #{tpu_custom_call.1} parent=5 // pred_check_branch
        %181 = sbr.rel (%p179) target = $region24
      $region23: #{tpu_custom_call.1} parent=5 // pred_region
        // Predicated region
        $region25: #{tpu_custom_call.1} parent=23 // pred_check
          %p182 = pneg %p47
        $region26: #{tpu_custom_call.1} parent=23 // pred_check_branch
          %184 = sbr.rel (%p182) target = $region28
        $region27: #{tpu_custom_call.1} parent=23 // pred_region
          %p185 = scmp.lt.s32.totalorder %s20, 1
          %s186 = scalar_select %p185, %s20, 1
          %p187 = scmp.lt.s32.totalorder %s21, 1
          %s188 = scalar_select %p187, %s21, 1
          %s189 = smul.addr %s186, 2
          %s190 = sadd.s32 %s188, %s189
          %s191 = smul.addr %s190, 4
          %s192 = scalar_lea.vmem %s0, %s191
        $region28: #{tpu_custom_call.1} parent=23 // pred_fallthru
          _
        // Predicated region
        $region29: #{tpu_custom_call.1} parent=23 // pred_check
          %p193 = pneg %p81
        $region30: #{tpu_custom_call.1} parent=23 // pred_check_branch
          %195 = sbr.rel (%p193) target = $region32
        $region31: #{tpu_custom_call.1} parent=23 // pred_region
          %s196 = sadd.s32 %s21, 1
          %p197 = scmp.lt.s32.totalorder %s196, 1
          %s198 = scalar_select %p197, %s196, 1
          %p199 = scmp.lt.s32.totalorder %s20, 1
          %s200 = scalar_select %p199, %s20, 1
          %p201 = scmp.lt.s32.totalorder %s198, 1
          %s202 = scalar_select %p201, %s198, 1
          %s203 = smul.addr %s200, 2
          %s204 = sadd.s32 %s202, %s203
          %s205 = smul.addr %s204, 4
          %s206 = scalar_lea.vmem %s1, %s205
          %s207 = sadd.s32 %s21, 1
          %p208 = scmp.lt.s32.totalorder %s207, 1
          %s209 = scalar_select %p208, %s207, 1
        $region32: #{tpu_custom_call.1} parent=23 // pred_fallthru
          _
      $region24: #{tpu_custom_call.1} parent=5 // pred_fallthru
        _
      %p210 = scmp.le.s32.totalorder 1, %s13
      %p211 = scmp.lt.s32.totalorder %s13, 5
      %p212 = pnand %p210, %p211
      %p213 = pneg %p212
      // Predicated region
      $region33: #{tpu_custom_call.1} parent=5 // pred_check
        _
      $region34: #{tpu_custom_call.1} parent=5 // pred_check_branch
        %215 = sbr.rel (%p212) target = $region36
      $region35: #{tpu_custom_call.1} parent=5 // pred_region
        %s216 = ssub.s32 %s13, 1
        %p217 = scmp.lt.s32.totalorder %s22, 1
        %s218 = scalar_select %p217, %s22, 1
        %p219 = scmp.lt.s32.totalorder %s23, 1
        %s220 = scalar_select %p219, %s23, 1
        %s221 = smul.addr %s218, 2
        %s222 = sadd.s32 %s220, %s221
        %s223 = smul.addr %s222, 4
        %s224 = scalar_lea.vmem %s0, %s223
        %p225 = pneg %p53
        %p226 = pneg %p50
        %s227 = sadd.s32 %s23, 1
        %p228 = scmp.lt.s32.totalorder %s227, 1
        %s229 = scalar_select %p228, %s227, 1
        %p230 = scmp.lt.s32.totalorder %s22, 1
        %s231 = scalar_select %p230, %s22, 1
        %p232 = scmp.lt.s32.totalorder %s229, 1
        %s233 = scalar_select %p232, %s229, 1
        %s234 = smul.addr %s231, 2
        %s235 = sadd.s32 %s233, %s234
        %s236 = smul.addr %s235, 4
        %s237 = scalar_lea.vmem %s1, %s236
        %p238 = pneg %p87
        %p239 = pneg %p84
        %p240 = pneg %p108
        %p241 = pneg %p105
        %p242 = pneg %p129
        %p243 = pneg %p126
        %p244 = pneg %p157
        %p245 = pneg %p154
        %s246 = sand.u32 %s144, 1
        %s247 = scalar_lea.sflag [#allocation4], %s246
        %s248 = sand.u32 %s144, 1
        %s249 = smul.addr %s248, 8
        %s250 = scalar_lea.vmem [#allocation3], %s249
        %p251 = scmp.lt.s32.totalorder %s22, 1
        %s252 = scalar_select %p251, %s22, 1
        %p253 = scmp.lt.s32.totalorder %s23, 1
        %s254 = scalar_select %p253, %s23, 1
        %s255 = smul.addr %s252, 2
        %s256 = sadd.s32 %s254, %s255
        %s257 = smul.addr %s256, 4
        %s258 = scalar_lea.vmem %s0, %s257
        %s259 = sadd.s32 %s23, 1
        %p260 = scmp.lt.s32.totalorder %s259, 1
        %s261 = scalar_select %p260, %s259, 1
        %p262 = scmp.lt.s32.totalorder %s22, 1
        %s263 = scalar_select %p262, %s22, 1
        %p264 = scmp.lt.s32.totalorder %s261, 1
        %s265 = scalar_select %p264, %s261, 1
        %s266 = smul.addr %s263, 2
        %s267 = sadd.s32 %s265, %s266
        %s268 = smul.addr %s267, 4
        %s269 = scalar_lea.vmem %s1, %s268
        %s270 = sadd.s32 %s23, 1
        %p271 = scmp.lt.s32.totalorder %s270, 1
        %s272 = scalar_select %p271, %s270, 1
        %v273 = vld [vmem:[%s258] sm:$0xf]
        %274 = vst [vmem:[#allocation2] sm:$0xf] %v273
        %v275 = vld [vmem:[%s269] sm:$0xf]
        %276 = vst [vmem:[#allocation2 + $0x4] sm:$0xf] %v275
        %v277 = vld [vmem:[%s2] sm:$0xff]
        %v278 = vld [vmem:[#allocation2] sm:$0xf]
        %s279 = scalar_lea.vmem %s2, 8
        %v280 = vld [vmem:[%s279] sm:$0xff]
        %v281 = vld [vmem:[#allocation2] sm:$0xff]
        %v283 = vcombine.high %v281, %v281
        %284 = vrot.lane.b32.xlu0 %v281, 127
        %v285 = vpop.permute.xlu0 %284
        %286 = vrot.lane.b32.xlu0 %v283, 127
        %v287 = vpop.permute.xlu0 %286
        %vm288 = vcmask 1039360
        %v289 = vsel %vm288, %v285, %v287
        %vm290 = vcmask 31744
        %v292 = vsel %vm290, %v280, 0
        %vm294 = vcmask 1043456
        %v295 = vsel %vm294, %v289, 0
        %297 = vmatprep.subr.mxu0 0.0
        %298 = vmatpush1.msra.mxu0 %v295
        %299 = vmatprep.subr.mxu0 0.0
        %300 = vmatpush1.msra.mxu0 0.0
        %301 = vmatprep.subr.mxu0 0.0
        %302 = vmatpush1.msra.mxu0 0.0
        %303 = vmatprep.subr.mxu0 0.0
        %304 = vmatpush1.msra.mxu0 0.0
        %305 = vmatprep.subr.mxu0 0.0
        %306 = vmatpush1.msra.mxu0 0.0
        %307 = vmatprep.subr.mxu0 0.0
        %308 = vmatpush1.msra.mxu0 0.0
        %309 = vmatprep.subr.mxu0 0.0
        %310 = vmatpush1.msra.mxu0 0.0
        %311 = vmatprep.subr.mxu0 0.0
        %312 = vmatpush1.msra.mxu0 0.0
        %313 = vmatprep.subr.mxu0 0.0
        %314 = vmatpush1.msra.mxu0 0.0
        %315 = vmatprep.subr.mxu0 0.0
        %316 = vmatpush1.msra.mxu0 0.0
        %317 = vmatprep.subr.mxu0 0.0
        %318 = vmatpush1.msra.mxu0 0.0
        %319 = vmatprep.subr.mxu0 0.0
        %320 = vmatpush1.msra.mxu0 0.0
        %321 = vmatprep.subr.mxu0 0.0
        %322 = vmatpush1.msra.mxu0 0.0
        %323 = vmatprep.subr.mxu0 0.0
        %324 = vmatpush1.msra.mxu0 0.0
        %325 = vmatprep.subr.mxu0 0.0
        %326 = vmatpush1.msra.mxu0 0.0
        %327 = vmatprep.subr.mxu0 0.0
        %328 = vmatpush1.msra.mxu0 0.0
        %329 = vmatprep.subr.mxu0 0.0
        %330 = vmatpush1.msra.mxu0 0.0
        %331 = vmatprep.subr.mxu0 0.0
        %332 = vmatpush1.msra.mxu0 0.0
        %333 = vmatprep.subr.mxu0 0.0
        %334 = vmatpush1.msra.mxu0 0.0
        %335 = vmatprep.subr.mxu0 0.0
        %336 = vmatpush1.msra.mxu0 0.0
        %337 = vmatprep.subr.mxu0 0.0
        %338 = vmatpush1.msra.mxu0 0.0
        %339 = vmatprep.subr.mxu0 0.0
        %340 = vmatpush1.msra.mxu0 0.0
        %341 = vmatprep.subr.mxu0 0.0
        %342 = vmatpush1.msra.mxu0 0.0
        %343 = vmatprep.subr.mxu0 0.0
        %344 = vmatpush1.msra.mxu0 0.0
        %345 = vmatprep.subr.mxu0 0.0
        %346 = vmatpush1.msra.mxu0 0.0
        %347 = vmatprep.subr.mxu0 0.0
        %348 = vmatpush1.msra.mxu0 0.0
        %349 = vmatprep.subr.mxu0 0.0
        %350 = vmatpush1.msra.mxu0 0.0
        %351 = vmatprep.subr.mxu0 0.0
        %352 = vmatpush1.msra.mxu0 0.0
        %353 = vmatprep.subr.mxu0 0.0
        %354 = vmatpush1.msra.mxu0 0.0
        %355 = vmatprep.subr.mxu0 0.0
        %356 = vmatpush1.msra.mxu0 0.0
        %357 = vmatprep.subr.mxu0 0.0
        %358 = vmatpush1.msra.mxu0 0.0
        %359 = vmatprep.subr.mxu0 0.0
        %360 = vmatpush1.msra.mxu0 0.0
        %361 = vmatprep.mubr.f32.mxu0 0.0
        %362 = vmatmul.mubr.f32.gmra.mrb[0].mxu0 %v292
        %v363 = vpop.f32.mrb[0].mxu0
        %v364 = vadd.f32 0.0, %v363
        %v365 = vpop.f32.mrb[0].mxu0
        %366 = vdwg.mxu0
        %v368 = vsel %vm290, %v277, 0
        %v371 = vsel %vm294, %v278, 0
        %373 = vmatprep.subr.mxu0 0.0
        %374 = vmatpush1.msra.mxu0 %v371
        %375 = vmatprep.subr.mxu0 0.0
        %376 = vmatpush1.msra.mxu0 0.0
        %377 = vmatprep.subr.mxu0 0.0
        %378 = vmatpush1.msra.mxu0 0.0
        %379 = vmatprep.subr.mxu0 0.0
        %380 = vmatpush1.msra.mxu0 0.0
        %381 = vmatprep.subr.mxu0 0.0
        %382 = vmatpush1.msra.mxu0 0.0
        %383 = vmatprep.subr.mxu0 0.0
        %384 = vmatpush1.msra.mxu0 0.0
        %385 = vmatprep.subr.mxu0 0.0
        %386 = vmatpush1.msra.mxu0 0.0
        %387 = vmatprep.subr.mxu0 0.0
        %388 = vmatpush1.msra.mxu0 0.0
        %389 = vmatprep.subr.mxu0 0.0
        %390 = vmatpush1.msra.mxu0 0.0
        %391 = vmatprep.subr.mxu0 0.0
        %392 = vmatpush1.msra.mxu0 0.0
        %393 = vmatprep.subr.mxu0 0.0
        %394 = vmatpush1.msra.mxu0 0.0
        %395 = vmatprep.subr.mxu0 0.0
        %396 = vmatpush1.msra.mxu0 0.0
        %397 = vmatprep.subr.mxu0 0.0
        %398 = vmatpush1.msra.mxu0 0.0
        %399 = vmatprep.subr.mxu0 0.0
        %400 = vmatpush1.msra.mxu0 0.0
        %401 = vmatprep.subr.mxu0 0.0
        %402 = vmatpush1.msra.mxu0 0.0
        %403 = vmatprep.subr.mxu0 0.0
        %404 = vmatpush1.msra.mxu0 0.0
        %405 = vmatprep.subr.mxu0 0.0
        %406 = vmatpush1.msra.mxu0 0.0
        %407 = vmatprep.subr.mxu0 0.0
        %408 = vmatpush1.msra.mxu0 0.0
        %409 = vmatprep.subr.mxu0 0.0
        %410 = vmatpush1.msra.mxu0 0.0
        %411 = vmatprep.subr.mxu0 0.0
        %412 = vmatpush1.msra.mxu0 0.0
        %413 = vmatprep.subr.mxu0 0.0
        %414 = vmatpush1.msra.mxu0 0.0
        %415 = vmatprep.subr.mxu0 0.0
        %416 = vmatpush1.msra.mxu0 0.0
        %417 = vmatprep.subr.mxu0 0.0
        %418 = vmatpush1.msra.mxu0 0.0
        %419 = vmatprep.subr.mxu0 0.0
        %420 = vmatpush1.msra.mxu0 0.0
        %421 = vmatprep.subr.mxu0 0.0
        %422 = vmatpush1.msra.mxu0 0.0
        %423 = vmatprep.subr.mxu0 0.0
        %424 = vmatpush1.msra.mxu0 0.0
        %425 = vmatprep.subr.mxu0 0.0
        %426 = vmatpush1.msra.mxu0 0.0
        %427 = vmatprep.subr.mxu0 0.0
        %428 = vmatpush1.msra.mxu0 0.0
        %429 = vmatprep.subr.mxu0 0.0
        %430 = vmatpush1.msra.mxu0 0.0
        %431 = vmatprep.subr.mxu0 0.0
        %432 = vmatpush1.msra.mxu0 0.0
        %433 = vmatprep.subr.mxu0 0.0
        %434 = vmatpush1.msra.mxu0 0.0
        %435 = vmatprep.subr.mxu0 0.0
        %436 = vmatpush1.msra.mxu0 0.0
        %437 = vmatprep.mubr.f32.mxu0 0.0
        %438 = vmatmul.mubr.f32.gmra.mrb[0].mxu0 %v368
        %v439 = vpop.f32.mrb[0].mxu0
        %v440 = vadd.f32 %v364, %v439
        %v441 = vpop.f32.mrb[0].mxu0
        %442 = vdwg.mxu0
        %s443 = scalar_lea.vmem %s2, 16
        %v444 = vld [vmem:[%s443] sm:$0xff]
        %v445 = vld [vmem:[#allocation2] sm:$0xff]
        %v447 = vcombine.high %v445, %v445
        %448 = vrot.lane.b32.xlu0 %v445, 126
        %v449 = vpop.permute.xlu0 %448
        %450 = vrot.lane.b32.xlu0 %v447, 126
        %v451 = vpop.permute.xlu0 %450
        %vm452 = vcmask 1031168
        %v453 = vsel %vm452, %v449, %v451
        %v455 = vsel %vm290, %v444, 0
        %v457 = vsel %vm294, %v453, 0
        %459 = vmatprep.subr.mxu0 0.0
        %460 = vmatpush1.msra.mxu0 %v457
        %461 = vmatprep.subr.mxu0 0.0
        %462 = vmatpush1.msra.mxu0 0.0
        %463 = vmatprep.subr.mxu0 0.0
        %464 = vmatpush1.msra.mxu0 0.0
        %465 = vmatprep.subr.mxu0 0.0
        %466 = vmatpush1.msra.mxu0 0.0
        %467 = vmatprep.subr.mxu0 0.0
        %468 = vmatpush1.msra.mxu0 0.0
        %469 = vmatprep.subr.mxu0 0.0
        %470 = vmatpush1.msra.mxu0 0.0
        %471 = vmatprep.subr.mxu0 0.0
        %472 = vmatpush1.msra.mxu0 0.0
        %473 = vmatprep.subr.mxu0 0.0
        %474 = vmatpush1.msra.mxu0 0.0
        %475 = vmatprep.subr.mxu0 0.0
        %476 = vmatpush1.msra.mxu0 0.0
        %477 = vmatprep.subr.mxu0 0.0
        %478 = vmatpush1.msra.mxu0 0.0
        %479 = vmatprep.subr.mxu0 0.0
        %480 = vmatpush1.msra.mxu0 0.0
        %481 = vmatprep.subr.mxu0 0.0
        %482 = vmatpush1.msra.mxu0 0.0
        %483 = vmatprep.subr.mxu0 0.0
        %484 = vmatpush1.msra.mxu0 0.0
        %485 = vmatprep.subr.mxu0 0.0
        %486 = vmatpush1.msra.mxu0 0.0
        %487 = vmatprep.subr.mxu0 0.0
        %488 = vmatpush1.msra.mxu0 0.0
        %489 = vmatprep.subr.mxu0 0.0
        %490 = vmatpush1.msra.mxu0 0.0
        %491 = vmatprep.subr.mxu0 0.0
        %492 = vmatpush1.msra.mxu0 0.0
        %493 = vmatprep.subr.mxu0 0.0
        %494 = vmatpush1.msra.mxu0 0.0
        %495 = vmatprep.subr.mxu0 0.0
        %496 = vmatpush1.msra.mxu0 0.0
        %497 = vmatprep.subr.mxu0 0.0
        %498 = vmatpush1.msra.mxu0 0.0
        %499 = vmatprep.subr.mxu0 0.0
        %500 = vmatpush1.msra.mxu0 0.0
        %501 = vmatprep.subr.mxu0 0.0
        %502 = vmatpush1.msra.mxu0 0.0
        %503 = vmatprep.subr.mxu0 0.0
        %504 = vmatpush1.msra.mxu0 0.0
        %505 = vmatprep.subr.mxu0 0.0
        %506 = vmatpush1.msra.mxu0 0.0
        %507 = vmatprep.subr.mxu0 0.0
        %508 = vmatpush1.msra.mxu0 0.0
        %509 = vmatprep.subr.mxu0 0.0
        %510 = vmatpush1.msra.mxu0 0.0
        %511 = vmatprep.subr.mxu0 0.0
        %512 = vmatpush1.msra.mxu0 0.0
        %513 = vmatprep.subr.mxu0 0.0
        %514 = vmatpush1.msra.mxu0 0.0
        %515 = vmatprep.subr.mxu0 0.0
        %516 = vmatpush1.msra.mxu0 0.0
        %517 = vmatprep.subr.mxu0 0.0
        %518 = vmatpush1.msra.mxu0 0.0
        %519 = vmatprep.subr.mxu0 0.0
        %520 = vmatpush1.msra.mxu0 0.0
        %521 = vmatprep.subr.mxu0 0.0
        %522 = vmatpush1.msra.mxu0 0.0
        %523 = vmatprep.mubr.f32.mxu0 0.0
        %524 = vmatmul.mubr.f32.gmra.mrb[0].mxu0 %v455
        %v525 = vpop.f32.mrb[0].mxu0
        %v526 = vadd.f32 0.0, %v525
        %v527 = vpop.f32.mrb[0].mxu0
        %528 = vdwg.mxu0
        %v529 = vadd.f32 %v440, %v526
        %s530 = scalar_lea.vmem %s2, 24
        %v531 = vld [vmem:[%s530] sm:$0xff]
        %v532 = vld [vmem:[#allocation2] sm:$0xff]
        %v534 = vcombine.high %v532, %v532
        %535 = vrot.lane.b32.xlu0 %v532, 112
        %v536 = vpop.permute.xlu0 %535
        %537 = vrot.lane.b32.xlu0 %v534, 112
        %v538 = vpop.permute.xlu0 %537
        %vm539 = vcmask 916480
        %v540 = vsel %vm539, %v536, %v538
        %v542 = vsel %vm290, %v531, 0
        %v544 = vsel %vm294, %v540, 0
        %546 = vmatprep.subr.mxu0 0.0
        %547 = vmatpush1.msra.mxu0 %v544
        %548 = vmatprep.subr.mxu0 0.0
        %549 = vmatpush1.msra.mxu0 0.0
        %550 = vmatprep.subr.mxu0 0.0
        %551 = vmatpush1.msra.mxu0 0.0
        %552 = vmatprep.subr.mxu0 0.0
        %553 = vmatpush1.msra.mxu0 0.0
        %554 = vmatprep.subr.mxu0 0.0
        %555 = vmatpush1.msra.mxu0 0.0
        %556 = vmatprep.subr.mxu0 0.0
        %557 = vmatpush1.msra.mxu0 0.0
        %558 = vmatprep.subr.mxu0 0.0
        %559 = vmatpush1.msra.mxu0 0.0
        %560 = vmatprep.subr.mxu0 0.0
        %561 = vmatpush1.msra.mxu0 0.0
        %562 = vmatprep.subr.mxu0 0.0
        %563 = vmatpush1.msra.mxu0 0.0
        %564 = vmatprep.subr.mxu0 0.0
        %565 = vmatpush1.msra.mxu0 0.0
        %566 = vmatprep.subr.mxu0 0.0
        %567 = vmatpush1.msra.mxu0 0.0
        %568 = vmatprep.subr.mxu0 0.0
        %569 = vmatpush1.msra.mxu0 0.0
        %570 = vmatprep.subr.mxu0 0.0
        %571 = vmatpush1.msra.mxu0 0.0
        %572 = vmatprep.subr.mxu0 0.0
        %573 = vmatpush1.msra.mxu0 0.0
        %574 = vmatprep.subr.mxu0 0.0
        %575 = vmatpush1.msra.mxu0 0.0
        %576 = vmatprep.subr.mxu0 0.0
        %577 = vmatpush1.msra.mxu0 0.0
        %578 = vmatprep.subr.mxu0 0.0
        %579 = vmatpush1.msra.mxu0 0.0
        %580 = vmatprep.subr.mxu0 0.0
        %581 = vmatpush1.msra.mxu0 0.0
        %582 = vmatprep.subr.mxu0 0.0
        %583 = vmatpush1.msra.mxu0 0.0
        %584 = vmatprep.subr.mxu0 0.0
        %585 = vmatpush1.msra.mxu0 0.0
        %586 = vmatprep.subr.mxu0 0.0
        %587 = vmatpush1.msra.mxu0 0.0
        %588 = vmatprep.subr.mxu0 0.0
        %589 = vmatpush1.msra.mxu0 0.0
        %590 = vmatprep.subr.mxu0 0.0
        %591 = vmatpush1.msra.mxu0 0.0
        %592 = vmatprep.subr.mxu0 0.0
        %593 = vmatpush1.msra.mxu0 0.0
        %594 = vmatprep.subr.mxu0 0.0
        %595 = vmatpush1.msra.mxu0 0.0
        %596 = vmatprep.subr.mxu0 0.0
        %597 = vmatpush1.msra.mxu0 0.0
        %598 = vmatprep.subr.mxu0 0.0
        %599 = vmatpush1.msra.mxu0 0.0
        %600 = vmatprep.subr.mxu0 0.0
        %601 = vmatpush1.msra.mxu0 0.0
        %602 = vmatprep.subr.mxu0 0.0
        %603 = vmatpush1.msra.mxu0 0.0
        %604 = vmatprep.subr.mxu0 0.0
        %605 = vmatpush1.msra.mxu0 0.0
        %606 = vmatprep.subr.mxu0 0.0
        %607 = vmatpush1.msra.mxu0 0.0
        %608 = vmatprep.subr.mxu0 0.0
        %609 = vmatpush1.msra.mxu0 0.0
        %610 = vmatprep.mubr.f32.mxu0 0.0
        %611 = vmatmul.mubr.f32.gmra.mrb[0].mxu0 %v542
        %v612 = vpop.f32.mrb[0].mxu0
        %v613 = vadd.f32 0.0, %v612
        %v614 = vpop.f32.mrb[0].mxu0
        %615 = vdwg.mxu0
        %v616 = vadd.f32 %v529, %v613
        %s617 = scalar_lea.vmem %s2, 32
        %v618 = vld [vmem:[%s617] sm:$0xff]
        %v619 = vld [vmem:[#allocation2] sm:$0xff]
        %v621 = vcombine.high %v619, %v619
        %622 = vrot.lane.b32.xlu0 %v619, 111
        %v623 = vpop.permute.xlu0 %622
        %624 = vrot.lane.b32.xlu0 %v621, 111
        %v625 = vpop.permute.xlu0 %624
        %vm626 = vcmask 908288
        %v627 = vsel %vm626, %v623, %v625
        %v629 = vsel %vm290, %v618, 0
        %v631 = vsel %vm294, %v627, 0
        %633 = vmatprep.subr.mxu0 0.0
        %634 = vmatpush1.msra.mxu0 %v631
        %635 = vmatprep.subr.mxu0 0.0
        %636 = vmatpush1.msra.mxu0 0.0
        %637 = vmatprep.subr.mxu0 0.0
        %638 = vmatpush1.msra.mxu0 0.0
        %639 = vmatprep.subr.mxu0 0.0
        %640 = vmatpush1.msra.mxu0 0.0
        %641 = vmatprep.subr.mxu0 0.0
        %642 = vmatpush1.msra.mxu0 0.0
        %643 = vmatprep.subr.mxu0 0.0
        %644 = vmatpush1.msra.mxu0 0.0
        %645 = vmatprep.subr.mxu0 0.0
        %646 = vmatpush1.msra.mxu0 0.0
        %647 = vmatprep.subr.mxu0 0.0
        %648 = vmatpush1.msra.mxu0 0.0
        %649 = vmatprep.subr.mxu0 0.0
        %650 = vmatpush1.msra.mxu0 0.0
        %651 = vmatprep.subr.mxu0 0.0
        %652 = vmatpush1.msra.mxu0 0.0
        %653 = vmatprep.subr.mxu0 0.0
        %654 = vmatpush1.msra.mxu0 0.0
        %655 = vmatprep.subr.mxu0 0.0
        %656 = vmatpush1.msra.mxu0 0.0
        %657 = vmatprep.subr.mxu0 0.0
        %658 = vmatpush1.msra.mxu0 0.0
        %659 = vmatprep.subr.mxu0 0.0
        %660 = vmatpush1.msra.mxu0 0.0
        %661 = vmatprep.subr.mxu0 0.0
        %662 = vmatpush1.msra.mxu0 0.0
        %663 = vmatprep.subr.mxu0 0.0
        %664 = vmatpush1.msra.mxu0 0.0
        %665 = vmatprep.subr.mxu0 0.0
        %666 = vmatpush1.msra.mxu0 0.0
        %667 = vmatprep.subr.mxu0 0.0
        %668 = vmatpush1.msra.mxu0 0.0
        %669 = vmatprep.subr.mxu0 0.0
        %670 = vmatpush1.msra.mxu0 0.0
        %671 = vmatprep.subr.mxu0 0.0
        %672 = vmatpush1.msra.mxu0 0.0
        %673 = vmatprep.subr.mxu0 0.0
        %674 = vmatpush1.msra.mxu0 0.0
        %675 = vmatprep.subr.mxu0 0.0
        %676 = vmatpush1.msra.mxu0 0.0
        %677 = vmatprep.subr.mxu0 0.0
        %678 = vmatpush1.msra.mxu0 0.0
        %679 = vmatprep.subr.mxu0 0.0
        %680 = vmatpush1.msra.mxu0 0.0
        %681 = vmatprep.subr.mxu0 0.0
        %682 = vmatpush1.msra.mxu0 0.0
        %683 = vmatprep.subr.mxu0 0.0
        %684 = vmatpush1.msra.mxu0 0.0
        %685 = vmatprep.subr.mxu0 0.0
        %686 = vmatpush1.msra.mxu0 0.0
        %687 = vmatprep.subr.mxu0 0.0
        %688 = vmatpush1.msra.mxu0 0.0
        %689 = vmatprep.subr.mxu0 0.0
        %690 = vmatpush1.msra.mxu0 0.0
        %691 = vmatprep.subr.mxu0 0.0
        %692 = vmatpush1.msra.mxu0 0.0
        %693 = vmatprep.subr.mxu0 0.0
        %694 = vmatpush1.msra.mxu0 0.0
        %695 = vmatprep.subr.mxu0 0.0
        %696 = vmatpush1.msra.mxu0 0.0
        %697 = vmatprep.mubr.f32.mxu0 0.0
        %698 = vmatmul.mubr.f32.gmra.mrb[0].mxu0 %v629
        %v699 = vpop.f32.mrb[0].mxu0
        %v700 = vadd.f32 0.0, %v699
        %v701 = vpop.f32.mrb[0].mxu0
        %702 = vdwg.mxu0
        %v703 = vadd.f32 %v616, %v700
        %s704 = scalar_lea.vmem %s2, 40
        %v705 = vld [vmem:[%s704] sm:$0xff]
        %v706 = vld [vmem:[#allocation2] sm:$0xff]
        %v708 = vcombine.high %v706, %v706
        %709 = vrot.lane.b32.xlu0 %v706, 110
        %v710 = vpop.permute.xlu0 %709
        %711 = vrot.lane.b32.xlu0 %v708, 110
        %v712 = vpop.permute.xlu0 %711
        %vm713 = vcmask 900096
        %v714 = vsel %vm713, %v710, %v712
        %v716 = vsel %vm290, %v705, 0
        %v718 = vsel %vm294, %v714, 0
        %720 = vmatprep.subr.mxu0 0.0
        %721 = vmatpush1.msra.mxu0 %v718
        %722 = vmatprep.subr.mxu0 0.0
        %723 = vmatpush1.msra.mxu0 0.0
        %724 = vmatprep.subr.mxu0 0.0
        %725 = vmatpush1.msra.mxu0 0.0
        %726 = vmatprep.subr.mxu0 0.0
        %727 = vmatpush1.msra.mxu0 0.0
        %728 = vmatprep.subr.mxu0 0.0
        %729 = vmatpush1.msra.mxu0 0.0
        %730 = vmatprep.subr.mxu0 0.0
        %731 = vmatpush1.msra.mxu0 0.0
        %732 = vmatprep.subr.mxu0 0.0
        %733 = vmatpush1.msra.mxu0 0.0
        %734 = vmatprep.subr.mxu0 0.0
        %735 = vmatpush1.msra.mxu0 0.0
        %736 = vmatprep.subr.mxu0 0.0
        %737 = vmatpush1.msra.mxu0 0.0
        %738 = vmatprep.subr.mxu0 0.0
        %739 = vmatpush1.msra.mxu0 0.0
        %740 = vmatprep.subr.mxu0 0.0
        %741 = vmatpush1.msra.mxu0 0.0
        %742 = vmatprep.subr.mxu0 0.0
        %743 = vmatpush1.msra.mxu0 0.0
        %744 = vmatprep.subr.mxu0 0.0
        %745 = vmatpush1.msra.mxu0 0.0
        %746 = vmatprep.subr.mxu0 0.0
        %747 = vmatpush1.msra.mxu0 0.0
        %748 = vmatprep.subr.mxu0 0.0
        %749 = vmatpush1.msra.mxu0 0.0
        %750 = vmatprep.subr.mxu0 0.0
        %751 = vmatpush1.msra.mxu0 0.0
        %752 = vmatprep.subr.mxu0 0.0
        %753 = vmatpush1.msra.mxu0 0.0
        %754 = vmatprep.subr.mxu0 0.0
        %755 = vmatpush1.msra.mxu0 0.0
        %756 = vmatprep.subr.mxu0 0.0
        %757 = vmatpush1.msra.mxu0 0.0
        %758 = vmatprep.subr.mxu0 0.0
        %759 = vmatpush1.msra.mxu0 0.0
        %760 = vmatprep.subr.mxu0 0.0
        %761 = vmatpush1.msra.mxu0 0.0
        %762 = vmatprep.subr.mxu0 0.0
        %763 = vmatpush1.msra.mxu0 0.0
        %764 = vmatprep.subr.mxu0 0.0
        %765 = vmatpush1.msra.mxu0 0.0
        %766 = vmatprep.subr.mxu0 0.0
        %767 = vmatpush1.msra.mxu0 0.0
        %768 = vmatprep.subr.mxu0 0.0
        %769 = vmatpush1.msra.mxu0 0.0
        %770 = vmatprep.subr.mxu0 0.0
        %771 = vmatpush1.msra.mxu0 0.0
        %772 = vmatprep.subr.mxu0 0.0
        %773 = vmatpush1.msra.mxu0 0.0
        %774 = vmatprep.subr.mxu0 0.0
        %775 = vmatpush1.msra.mxu0 0.0
        %776 = vmatprep.subr.mxu0 0.0
        %777 = vmatpush1.msra.mxu0 0.0
        %778 = vmatprep.subr.mxu0 0.0
        %779 = vmatpush1.msra.mxu0 0.0
        %780 = vmatprep.subr.mxu0 0.0
        %781 = vmatpush1.msra.mxu0 0.0
        %782 = vmatprep.subr.mxu0 0.0
        %783 = vmatpush1.msra.mxu0 0.0
        %784 = vmatprep.mubr.f32.mxu0 0.0
        %785 = vmatmul.mubr.f32.gmra.mrb[0].mxu0 %v716
        %v786 = vpop.f32.mrb[0].mxu0
        %v787 = vadd.f32 0.0, %v786
        %v788 = vpop.f32.mrb[0].mxu0
        %789 = vdwg.mxu0
        %v790 = vadd.f32 %v703, %v787
        %s791 = scalar_lea.vmem %s2, 48
        %v792 = vld [vmem:[%s791] sm:$0xff]
        %v793 = vld [vmem:[#allocation2] sm:$0xff]
        %v795 = vcombine.high %v793, %v793
        %796 = vrot.lane.b32.xlu0 %v793, 96
        %v797 = vpop.permute.xlu0 %796
        %798 = vrot.lane.b32.xlu0 %v795, 96
        %v799 = vpop.permute.xlu0 %798
        %vm800 = vcmask 785408
        %v801 = vsel %vm800, %v797, %v799
        %v803 = vsel %vm290, %v792, 0
        %v805 = vsel %vm294, %v801, 0
        %807 = vmatprep.subr.mxu0 0.0
        %808 = vmatpush1.msra.mxu0 %v805
        %809 = vmatprep.subr.mxu0 0.0
        %810 = vmatpush1.msra.mxu0 0.0
        %811 = vmatprep.subr.mxu0 0.0
        %812 = vmatpush1.msra.mxu0 0.0
        %813 = vmatprep.subr.mxu0 0.0
        %814 = vmatpush1.msra.mxu0 0.0
        %815 = vmatprep.subr.mxu0 0.0
        %816 = vmatpush1.msra.mxu0 0.0
        %817 = vmatprep.subr.mxu0 0.0
        %818 = vmatpush1.msra.mxu0 0.0
        %819 = vmatprep.subr.mxu0 0.0
        %820 = vmatpush1.msra.mxu0 0.0
        %821 = vmatprep.subr.mxu0 0.0
        %822 = vmatpush1.msra.mxu0 0.0
        %823 = vmatprep.subr.mxu0 0.0
        %824 = vmatpush1.msra.mxu0 0.0
        %825 = vmatprep.subr.mxu0 0.0
        %826 = vmatpush1.msra.mxu0 0.0
        %827 = vmatprep.subr.mxu0 0.0
        %828 = vmatpush1.msra.mxu0 0.0
        %829 = vmatprep.subr.mxu0 0.0
        %830 = vmatpush1.msra.mxu0 0.0
        %831 = vmatprep.subr.mxu0 0.0
        %832 = vmatpush1.msra.mxu0 0.0
        %833 = vmatprep.subr.mxu0 0.0
        %834 = vmatpush1.msra.mxu0 0.0
        %835 = vmatprep.subr.mxu0 0.0
        %836 = vmatpush1.msra.mxu0 0.0
        %837 = vmatprep.subr.mxu0 0.0
        %838 = vmatpush1.msra.mxu0 0.0
        %839 = vmatprep.subr.mxu0 0.0
        %840 = vmatpush1.msra.mxu0 0.0
        %841 = vmatprep.subr.mxu0 0.0
        %842 = vmatpush1.msra.mxu0 0.0
        %843 = vmatprep.subr.mxu0 0.0
        %844 = vmatpush1.msra.mxu0 0.0
        %845 = vmatprep.subr.mxu0 0.0
        %846 = vmatpush1.msra.mxu0 0.0
        %847 = vmatprep.subr.mxu0 0.0
        %848 = vmatpush1.msra.mxu0 0.0
        %849 = vmatprep.subr.mxu0 0.0
        %850 = vmatpush1.msra.mxu0 0.0
        %851 = vmatprep.subr.mxu0 0.0
        %852 = vmatpush1.msra.mxu0 0.0
        %853 = vmatprep.subr.mxu0 0.0
        %854 = vmatpush1.msra.mxu0 0.0
        %855 = vmatprep.subr.mxu0 0.0
        %856 = vmatpush1.msra.mxu0 0.0
        %857 = vmatprep.subr.mxu0 0.0
        %858 = vmatpush1.msra.mxu0 0.0
        %859 = vmatprep.subr.mxu0 0.0
        %860 = vmatpush1.msra.mxu0 0.0
        %861 = vmatprep.subr.mxu0 0.0
        %862 = vmatpush1.msra.mxu0 0.0
        %863 = vmatprep.subr.mxu0 0.0
        %864 = vmatpush1.msra.mxu0 0.0
        %865 = vmatprep.subr.mxu0 0.0
        %866 = vmatpush1.msra.mxu0 0.0
        %867 = vmatprep.subr.mxu0 0.0
        %868 = vmatpush1.msra.mxu0 0.0
        %869 = vmatprep.subr.mxu0 0.0
        %870 = vmatpush1.msra.mxu0 0.0
        %871 = vmatprep.mubr.f32.mxu0 0.0
        %872 = vmatmul.mubr.f32.gmra.mrb[0].mxu0 %v803
        %v873 = vpop.f32.mrb[0].mxu0
        %v874 = vadd.f32 0.0, %v873
        %v875 = vpop.f32.mrb[0].mxu0
        %876 = vdwg.mxu0
        %v877 = vadd.f32 %v790, %v874
        %s878 = scalar_lea.vmem %s2, 56
        %v879 = vld [vmem:[%s878] sm:$0xff]
        %v880 = vld [vmem:[#allocation2] sm:$0xff]
        %v882 = vcombine.high %v880, %v880
        %883 = vrot.lane.b32.xlu0 %v880, 95
        %v884 = vpop.permute.xlu0 %883
        %885 = vrot.lane.b32.xlu0 %v882, 95
        %v886 = vpop.permute.xlu0 %885
        %vm887 = vcmask 777216
        %v888 = vsel %vm887, %v884, %v886
        %v890 = vsel %vm290, %v879, 0
        %v892 = vsel %vm294, %v888, 0
        %894 = vmatprep.subr.mxu0 0.0
        %895 = vmatpush1.msra.mxu0 %v892
        %896 = vmatprep.subr.mxu0 0.0
        %897 = vmatpush1.msra.mxu0 0.0
        %898 = vmatprep.subr.mxu0 0.0
        %899 = vmatpush1.msra.mxu0 0.0
        %900 = vmatprep.subr.mxu0 0.0
        %901 = vmatpush1.msra.mxu0 0.0
        %902 = vmatprep.subr.mxu0 0.0
        %903 = vmatpush1.msra.mxu0 0.0
        %904 = vmatprep.subr.mxu0 0.0
        %905 = vmatpush1.msra.mxu0 0.0
        %906 = vmatprep.subr.mxu0 0.0
        %907 = vmatpush1.msra.mxu0 0.0
        %908 = vmatprep.subr.mxu0 0.0
        %909 = vmatpush1.msra.mxu0 0.0
        %910 = vmatprep.subr.mxu0 0.0
        %911 = vmatpush1.msra.mxu0 0.0
        %912 = vmatprep.subr.mxu0 0.0
        %913 = vmatpush1.msra.mxu0 0.0
        %914 = vmatprep.subr.mxu0 0.0
        %915 = vmatpush1.msra.mxu0 0.0
        %916 = vmatprep.subr.mxu0 0.0
        %917 = vmatpush1.msra.mxu0 0.0
        %918 = vmatprep.subr.mxu0 0.0
        %919 = vmatpush1.msra.mxu0 0.0
        %920 = vmatprep.subr.mxu0 0.0
        %921 = vmatpush1.msra.mxu0 0.0
        %922 = vmatprep.subr.mxu0 0.0
        %923 = vmatpush1.msra.mxu0 0.0
        %924 = vmatprep.subr.mxu0 0.0
        %925 = vmatpush1.msra.mxu0 0.0
        %926 = vmatprep.subr.mxu0 0.0
        %927 = vmatpush1.msra.mxu0 0.0
        %928 = vmatprep.subr.mxu0 0.0
        %929 = vmatpush1.msra.mxu0 0.0
        %930 = vmatprep.subr.mxu0 0.0
        %931 = vmatpush1.msra.mxu0 0.0
        %932 = vmatprep.subr.mxu0 0.0
        %933 = vmatpush1.msra.mxu0 0.0
        %934 = vmatprep.subr.mxu0 0.0
        %935 = vmatpush1.msra.mxu0 0.0
        %936 = vmatprep.subr.mxu0 0.0
        %937 = vmatpush1.msra.mxu0 0.0
        %938 = vmatprep.subr.mxu0 0.0
        %939 = vmatpush1.msra.mxu0 0.0
        %940 = vmatprep.subr.mxu0 0.0
        %941 = vmatpush1.msra.mxu0 0.0
        %942 = vmatprep.subr.mxu0 0.0
        %943 = vmatpush1.msra.mxu0 0.0
        %944 = vmatprep.subr.mxu0 0.0
        %945 = vmatpush1.msra.mxu0 0.0
        %946 = vmatprep.subr.mxu0 0.0
        %947 = vmatpush1.msra.mxu0 0.0
        %948 = vmatprep.subr.mxu0 0.0
        %949 = vmatpush1.msra.mxu0 0.0
        %950 = vmatprep.subr.mxu0 0.0
        %951 = vmatpush1.msra.mxu0 0.0
        %952 = vmatprep.subr.mxu0 0.0
        %953 = vmatpush1.msra.mxu0 0.0
        %954 = vmatprep.subr.mxu0 0.0
        %955 = vmatpush1.msra.mxu0 0.0
        %956 = vmatprep.subr.mxu0 0.0
        %957 = vmatpush1.msra.mxu0 0.0
        %958 = vmatprep.mubr.f32.mxu0 0.0
        %959 = vmatmul.mubr.f32.gmra.mrb[0].mxu0 %v890
        %v960 = vpop.f32.mrb[0].mxu0
        %v961 = vadd.f32 0.0, %v960
        %v962 = vpop.f32.mrb[0].mxu0
        %963 = vdwg.mxu0
        %v964 = vadd.f32 %v877, %v961
        %s965 = scalar_lea.vmem %s2, 64
        %v966 = vld [vmem:[%s965] sm:$0xff]
        %v967 = vld [vmem:[#allocation2] sm:$0xff]
        %v969 = vcombine.high %v967, %v967
        %970 = vrot.lane.b32.xlu0 %v967, 94
        %v971 = vpop.permute.xlu0 %970
        %972 = vrot.lane.b32.xlu0 %v969, 94
        %v973 = vpop.permute.xlu0 %972
        %vm974 = vcmask 769024
        %v975 = vsel %vm974, %v971, %v973
        %v977 = vsel %vm290, %v966, 0
        %v979 = vsel %vm294, %v975, 0
        %981 = vmatprep.subr.mxu0 0.0
        %982 = vmatpush1.msra.mxu0 %v979
        %983 = vmatprep.subr.mxu0 0.0
        %984 = vmatpush1.msra.mxu0 0.0
        %985 = vmatprep.subr.mxu0 0.0
        %986 = vmatpush1.msra.mxu0 0.0
        %987 = vmatprep.subr.mxu0 0.0
        %988 = vmatpush1.msra.mxu0 0.0
        %989 = vmatprep.subr.mxu0 0.0
        %990 = vmatpush1.msra.mxu0 0.0
        %991 = vmatprep.subr.mxu0 0.0
        %992 = vmatpush1.msra.mxu0 0.0
        %993 = vmatprep.subr.mxu0 0.0
        %994 = vmatpush1.msra.mxu0 0.0
        %995 = vmatprep.subr.mxu0 0.0
        %996 = vmatpush1.msra.mxu0 0.0
        %997 = vmatprep.subr.mxu0 0.0
        %998 = vmatpush1.msra.mxu0 0.0
        %999 = vmatprep.subr.mxu0 0.0
        %1000 = vmatpush1.msra.mxu0 0.0
        %1001 = vmatprep.subr.mxu0 0.0
        %1002 = vmatpush1.msra.mxu0 0.0
        %1003 = vmatprep.subr.mxu0 0.0
        %1004 = vmatpush1.msra.mxu0 0.0
        %1005 = vmatprep.subr.mxu0 0.0
        %1006 = vmatpush1.msra.mxu0 0.0
        %1007 = vmatprep.subr.mxu0 0.0
        %1008 = vmatpush1.msra.mxu0 0.0
        %1009 = vmatprep.subr.mxu0 0.0
        %1010 = vmatpush1.msra.mxu0 0.0
        %1011 = vmatprep.subr.mxu0 0.0
        %1012 = vmatpush1.msra.mxu0 0.0
        %1013 = vmatprep.subr.mxu0 0.0
        %1014 = vmatpush1.msra.mxu0 0.0
        %1015 = vmatprep.subr.mxu0 0.0
        %1016 = vmatpush1.msra.mxu0 0.0
        %1017 = vmatprep.subr.mxu0 0.0
        %1018 = vmatpush1.msra.mxu0 0.0
        %1019 = vmatprep.subr.mxu0 0.0
        %1020 = vmatpush1.msra.mxu0 0.0
        %1021 = vmatprep.subr.mxu0 0.0
        %1022 = vmatpush1.msra.mxu0 0.0
        %1023 = vmatprep.subr.mxu0 0.0
        %1024 = vmatpush1.msra.mxu0 0.0
        %1025 = vmatprep.subr.mxu0 0.0
        %1026 = vmatpush1.msra.mxu0 0.0
        %1027 = vmatprep.subr.mxu0 0.0
        %1028 = vmatpush1.msra.mxu0 0.0
        %1029 = vmatprep.subr.mxu0 0.0
        %1030 = vmatpush1.msra.mxu0 0.0
        %1031 = vmatprep.subr.mxu0 0.0
        %1032 = vmatpush1.msra.mxu0 0.0
        %1033 = vmatprep.subr.mxu0 0.0
        %1034 = vmatpush1.msra.mxu0 0.0
        %1035 = vmatprep.subr.mxu0 0.0
        %1036 = vmatpush1.msra.mxu0 0.0
        %1037 = vmatprep.subr.mxu0 0.0
        %1038 = vmatpush1.msra.mxu0 0.0
        %1039 = vmatprep.subr.mxu0 0.0
        %1040 = vmatpush1.msra.mxu0 0.0
        %1041 = vmatprep.subr.mxu0 0.0
        %1042 = vmatpush1.msra.mxu0 0.0
        %1043 = vmatprep.subr.mxu0 0.0
        %1044 = vmatpush1.msra.mxu0 0.0
        %1045 = vmatprep.mubr.f32.mxu0 0.0
        %1046 = vmatmul.mubr.f32.gmra.mrb[0].mxu0 %v977
        %v1047 = vpop.f32.mrb[0].mxu0
        %v1048 = vadd.f32 0.0, %v1047
        %v1049 = vpop.f32.mrb[0].mxu0
        %1050 = vdwg.mxu0
        %v1051 = vadd.f32 %v964, %v1048
        %v1052 = vld [vmem:[%s3] sm:$0xff]
        %1054 = vset.pattern.permute.xlu0 0
        %1055 = vperm.xlu0 %1054, %v1052
        %v1056 = vpop.permute.xlu0 %1055
        %v1058 = vadd.f32 %v1051, %v1056
        %1059 = vst [vmem:[%s250] sm:$0xff] %v1058
        %s1060 = sand.u32 %s144, 1
        %s1061 = scalar_lea.sflag [#allocation4], %s1060
        %s1062 = sand.u32 %s144, 1
        %s1063 = smul.addr %s1062, 8
        %s1064 = scalar_lea.vmem [#allocation3], %s1063
        // Predicated region
        $region37: #{tpu_custom_call.1} parent=35 // pred_check
          %p1065 = pneg %p154
        $region38: #{tpu_custom_call.1} parent=35 // pred_check_branch
          %1067 = sbr.rel (%p1065) target = $region40
        $region39: #{tpu_custom_call.1} parent=35 // pred_region
          %s1069 = ssub.s32 128, 128
          %1070 = vsyncadd %s1061, %s1069
          %s1071 = smul.addr %s22, 2
          %s1072 = sadd.s32 %s23, %s1071
          %s1073 = smul.addr %s1072, 128
          %s1074 = scalar_lea.hbm %s4, %s1073
          %s1076 = sshll.u32 %s1064, 4
          %s1077 = int_to_ptr.vmem [resolvable:$true] %s1076
          %1079 = dma.vmem_to_hbm [thread:$0]  %s1077, 128, %s1074, %s1061
        $region40: #{tpu_custom_call.1} parent=35 // pred_fallthru
          _
      $region36: #{tpu_custom_call.1} parent=5 // pred_fallthru
        _
      %p1080 = scmp.le.s32.totalorder 2, %s13
      // Predicated region
      $region41: #{tpu_custom_call.1} parent=5 // pred_check
        %p1081 = pneg %p1080
      $region42: #{tpu_custom_call.1} parent=5 // pred_check_branch
        %1083 = sbr.rel (%p1081) target = $region44
      $region43: #{tpu_custom_call.1} parent=5 // pred_region
        %s1084 = ssub.s32 %s13, 2
        // Predicated region
        $region45: #{tpu_custom_call.1} parent=43 // pred_check
          %p1085 = pneg %p160
        $region46: #{tpu_custom_call.1} parent=43 // pred_check_branch
          %1087 = sbr.rel (%p1085) target = $region48
        $region47: #{tpu_custom_call.1} parent=43 // pred_region
          %s1088 = sand.u32 %s145, 1
          %s1089 = scalar_lea.sflag [#allocation4], %s1088
          %s1090 = sand.u32 %s145, 1
          %s1091 = smul.addr %s1090, 8
          %s1092 = scalar_lea.vmem [#allocation3], %s1091
          %1093 = dma.done %s1089, 128
        $region48: #{tpu_custom_call.1} parent=43 // pred_fallthru
          _
      $region44: #{tpu_custom_call.1} parent=5 // pred_fallthru
        _
    $region6: #{tpu_custom_call.1} parent=1 // loop_footer
      %s17 = sadd.s32 1, %s13
    $region7: #{tpu_custom_call.1} parent=1 // loop_footer_branch
      %12 = sbr.rel target = $region3
    $region8: #{tpu_custom_call.1} parent=1 // loop_exit
      _
    %1094 = vsyncpa [#allocation4], 1
    %s1095 = scalar_lea.sflag [#allocation4], 1
    %1096 = vsyncpa %s1095, 1

</llo_original>
